<compile_context>
chip_gen: v7x
topology: tpu7x:2x2x1
jax: 0.10.0
libtpu: 0.0.40
codegen_flags: <defaults>
</compile_context>

<pallas_src>
import functools

import jax
import jax.numpy as jnp
import numpy as np
from jax.experimental import pallas as pl
from jax.experimental.pallas import tpu as pltpu


_CHUNK_BYTES_THRESHOLD = 4 << 20   # below this, a single DMA is plenty
_MAX_CHUNKS = 4                    # a handful of parallel DMAs is enough


def _dma_copy_kernel(x_ref, o_ref, sems, *, row_splits):
    """Identity copy HBM->HBM via async DMA (no VMEM staging, no grid)."""
    if len(row_splits) == 1:
        cp = pltpu.make_async_copy(x_ref, o_ref, sems.at[0])
        cp.start()
        cp.wait()
        return
    copies = []
    for idx, (r0, rn) in enumerate(row_splits):
        cp = pltpu.make_async_copy(
            x_ref.at[pl.ds(r0, rn)], o_ref.at[pl.ds(r0, rn)], sems.at[idx]
        )
        cp.start()
        copies.append(cp)
    for cp in copies:
        cp.wait()


def _pallas_materializing_copy(x):
    """Return a freshly materialized copy of `x` (same shape/dtype) via DMA."""
    nbytes = x.size * np.dtype(x.dtype).itemsize
    lead = x.shape[0] if x.ndim > 0 else 1

    if nbytes >= _CHUNK_BYTES_THRESHOLD and lead >= 2:
        nchunks = min(lead, _MAX_CHUNKS)
    else:
        nchunks = 1

    # Static, even split along axis 0.
    base, rem = divmod(lead, nchunks)
    row_splits, r0 = [], 0
    for c in range(nchunks):
        rn = base + (1 if c < rem else 0)
        row_splits.append((r0, rn))
        r0 += rn

    kernel = functools.partial(_dma_copy_kernel, row_splits=tuple(row_splits))
    return pl.pallas_call(
        kernel,
        out_shape=jax.ShapeDtypeStruct(x.shape, x.dtype),
        in_specs=[pl.BlockSpec(memory_space=pl.ANY)],
        out_specs=pl.BlockSpec(memory_space=pl.ANY),
        scratch_shapes=[pltpu.SemaphoreType.DMA((nchunks,))],
    )(x)


def _resolve_target_shape(shape, n):
    """Mirror torch .view semantics: optional single -1, element count must match."""
    shape = tuple(int(s) for s in shape)
    if shape.count(-1) > 1:
        raise ValueError("only one dimension can be inferred (-1)")
    if -1 in shape:
        known = 1
        for s in shape:
            if s != -1:
                known *= s
        if known <= 0 or n % known != 0:
            raise ValueError(f"shape {shape} is invalid for input of size {n} per batch")
        shape = tuple(n // known if s == -1 else s for s in shape)
    if int(np.prod(shape)) != n if shape else n != 1:
        raise ValueError(
            f"shape (batch, {shape}) is invalid for input with {n} elements per batch"
        )
    return shape


def reshape_forward(x, shape, *, use_pallas_copy=False):
    """Pallas/JAX equivalent of Reshape.forward: x.view(x.size(0), *shape).

    Default path is a metadata-only reshape (zero HBM traffic), exactly like
    .view().  Set use_pallas_copy=True to materialize the result through an
    explicit HBM->HBM DMA Pallas kernel (produces a new buffer).
    """
    B = x.shape[0]
    n = int(np.prod(x.shape[1:])) if x.ndim > 1 else 1
    tgt = _resolve_target_shape(shape, n)
    out_shape = (B,) + tgt

    # Row-major reshape matches torch .view ordering exactly; metadata-only.
    x_view = x.reshape(out_shape)

    if not use_pallas_copy:
        # Recommended: .view() is a zero-cost metadata change in JAX/XLA.
        return x_view

    # Explicit materializing copy, exact output shape (no pad, no slice).
    return _pallas_materializing_copy(x_view)


class Reshape:
    """Mirror of the PyTorch module's interface."""

    def __init__(self, shape=()):
        self.shape = list(shape)

    def __call__(self, x, *, use_pallas_copy=False):
        return reshape_forward(x, self.shape, use_pallas_copy=use_pallas_copy)

    def extra_repr(self):
        return "shape={}".format(self.shape)


if __name__ == "__main__":
    key = jax.random.PRNGKey(0)
    B, C, H, W = 2, 4, 16, 16
    x = jax.random.normal(key, (B, C, H, W), dtype=jnp.float32)

    target_shape = [C * H * W]  # typical "flatten before linear" usage

    # Default (recommended) path: metadata-only, no kernel, no HBM round-trip.
    y_fast = reshape_forward(x, target_shape)
    jax.block_until_ready(y_fast)

    # Explicit Pallas copy path (single HBM->HBM DMA).
    y = reshape_forward(x, target_shape, use_pallas_copy=True)
    jax.block_until_ready(y)

    ref = np.asarray(x).reshape(B, *target_shape)
    assert y.shape == (B, C * H * W), y.shape
    assert y.dtype == x.dtype
    np.testing.assert_array_equal(np.asarray(y), ref)
    np.testing.assert_array_equal(np.asarray(y_fast), ref)

    # Multi-dim target with -1 inference (torch .view semantics), Pallas path.
    y2 = reshape_forward(x, [C, -1], use_pallas_copy=True)
    jax.block_until_ready(y2)
    np.testing.assert_array_equal(np.asarray(y2), np.asarray(x).reshape(B, C, H * W))

    # Moderately larger tensor (4 MiB) to exercise the chunked multi-DMA path.
    key2 = jax.random.PRNGKey(1)
    xb = jax.random.normal(key2, (8, 512, 256), dtype=jnp.float32)
    yb = reshape_forward(xb, [512 * 256], use_pallas_copy=True)
    jax.block_until_ready(yb)
    np.testing.assert_array_equal(np.asarray(yb), np.asarray(xb).reshape(8, 512 * 256))

    print("KERNEL_OK")
</pallas_src>

<mosaic_0001>
module attributes {stable_mosaic.version = 11 : i64} {
  func.func @_dma_copy_kernel(%arg0: memref<2x1024xf32, #tpu.memory_space<any>>, %arg1: memref<2x1024xf32, #tpu.memory_space<any>>, %arg2: memref<1x!tpu.dma_semaphore, #tpu.memory_space<semaphore_mem>>) attributes {dimension_semantics = [], scalar_prefetch = 0 : i64, scratch_operands = 1 : i64, tpu.core_type = #tpu.core_type<tc>} {
    %c0_i32 = arith.constant 0 : i32
    %0 = tpu.memref_slice %arg2[%c0_i32] : memref<1x!tpu.dma_semaphore, #tpu.memory_space<semaphore_mem>> -> memref<1x!tpu.dma_semaphore, #tpu.memory_space<semaphore_mem>>
    %1 = tpu.memref_squeeze %0 : memref<1x!tpu.dma_semaphore, #tpu.memory_space<semaphore_mem>> -> memref<!tpu.dma_semaphore, #tpu.memory_space<semaphore_mem>>
    tpu.enqueue_dma source(%arg0 : memref<2x1024xf32, #tpu.memory_space<any>>) target(%arg1 : memref<2x1024xf32, #tpu.memory_space<any>>) target_semaphore(%1 : memref<!tpu.dma_semaphore, #tpu.memory_space<semaphore_mem>>)
    %c0_i32_0 = arith.constant 0 : i32
    %2 = tpu.memref_slice %arg2[%c0_i32_0] : memref<1x!tpu.dma_semaphore, #tpu.memory_space<semaphore_mem>> -> memref<1x!tpu.dma_semaphore, #tpu.memory_space<semaphore_mem>>
    %3 = tpu.memref_squeeze %2 : memref<1x!tpu.dma_semaphore, #tpu.memory_space<semaphore_mem>> -> memref<!tpu.dma_semaphore, #tpu.memory_space<semaphore_mem>>
    tpu.wait_dma2 semaphore(%3 : memref<!tpu.dma_semaphore, #tpu.memory_space<semaphore_mem>>) src(%arg0 : memref<2x1024xf32, #tpu.memory_space<any>>) dst(%arg1 : memref<2x1024xf32, #tpu.memory_space<any>>)
    return
  }
}

</mosaic_0001>

<llo_original>
// kernel: tpu_custom_call.1
$region0: #{tpu_custom_call.1}
  #allocation0 [shape = 'u32[]', space=smem, size = 0x4, offset = 0x4, fixed_abs, tag = 'smem constant byte address 0x4 - core index']
  #allocation1 [shape = 'u32[144,128]{1,0:T(1,128)}', space=vmem, size = 0x12000, scoped, tag = 'internal scratch']
  #allocation2 [shape = 's32[1]{0}', space=sflag, size = 0x4, scoped, tag = 'scratch operand']
  #allocation3 [shape = 's32[]', space=sflag, size = 0x4, offset = 0, fixed_abs, tag = 'sflag constant byte address 0x0 - dummy sync flag']
  #allocation4 [shape = 'u32[0]{0}', space=smem, size = 0, offset = 0, fixed_abs, tag = 'smem constant byte address 0x0 - null']
  %s0 = inlined_call_operand.hbm [shape: f32[2,1024], index: 0, kind: input, shape index: {}]
  %s1 = inlined_call_operand.hbm [shape: f32[2,1024], index: 1, kind: output, shape index: {}]
  %s2 = sld [smem:[#allocation0]]
  $region2: #{tpu_custom_call.1} parent=0
    _
  %s4 = ssub.s32 1, %s2
  %s5 = scalar_select 0, %s4, %s2
  %s7 = sshll.u32 1, 14
  %s8 = sxor.u32 4294967295, %s7
  %s11 = sshll.u32 3, 24
  %s12 = sxor.u32 4294967295, %s11
  %s13 = sand.u32 0, %s12
  %s15 = sor.u32 %s13, 0
  %18 = dma.general %s0, 256, %s1, [#allocation2], [#allocation3], [#allocation4], %s15, 0
  %s19 = smul.u32 2, 1
  %s20 = smul.u32 %s19, 8
  %s21 = sshll.u32 %s20, 4
  %22 = dma.done [#allocation2], %s21
  %23 = vsyncmov [#allocation2]
  %s24 = vpop.sfrf %23
  %p25 = scmp.eq.s32.totalorder %s24, 0
  %p26 = pneg %p25
  %28 = shalt.err (%p26)

</llo_original>
